<compile_context>
chip_gen: v6e
topology: v6e:2x2x1
jax: 0.10.0
libtpu: 0.0.40
codegen_flags: <defaults>
</compile_context>

<pallas_src>
import jax
import jax.numpy as jnp
from jax.experimental import pallas as pl
from jax.experimental.pallas import tpu as pltpu


def _not_not_kernel(a_ref, o_ref):
    # logical_not(logical_not(a)) == (a != 0); compare in the original dtype
    # so 0.5, NaN, 1e-3 etc. all map to True.
    o_ref[...] = (a_ref[...] != 0).astype(o_ref.dtype)


_TILE_BYTES = 4 << 20           # ~4 MiB of input per grid step
_SINGLE_BLOCK_BYTES = 512 << 10  # below this: one full-array block

# Resolved on first kernel launch: jnp.bool_ if Mosaic accepts the i1 store,
# otherwise jnp.int8 (with a wrapper-side cast).
_out_dtype = None


def _launch(a2d, rows, lane, block_rows, grid, out_dtype):
    return pl.pallas_call(
        _not_not_kernel,
        out_shape=jax.ShapeDtypeStruct((rows, lane), out_dtype),
        grid=grid,
        in_specs=[pl.BlockSpec((block_rows, lane), lambda i: (i, 0))],
        out_specs=pl.BlockSpec((block_rows, lane), lambda i: (i, 0)),
        compiler_params=pltpu.CompilerParams(
            dimension_semantics=("parallel",),
            vmem_limit_bytes=32 << 20,
        ),
    )(a2d)


def _run_kernel(a2d, rows, lane, block_rows, grid):
    global _out_dtype
    if _out_dtype is None:
        try:
            out = _launch(a2d, rows, lane, block_rows, grid, jnp.bool_)
            _out_dtype = jnp.bool_
            return out
        except Exception:
            # Fallback if this JAX/Mosaic version rejects bool outputs.
            _out_dtype = jnp.int8
    out = _launch(a2d, rows, lane, block_rows, grid, _out_dtype)
    if _out_dtype is not jnp.bool_:
        out = out.astype(jnp.bool_)
    return out


def _tiled_not_not(flat, lane):
    """Run the kernel over a flat array whose length is a multiple of `lane`."""
    itemsize = flat.dtype.itemsize
    rows = flat.shape[0] // lane
    a2d = flat.reshape(rows, lane)
    in_bytes = rows * lane * itemsize

    if in_bytes <= _SINGLE_BLOCK_BYTES:
        # Small array: one full-array block (block == array dims is always legal).
        block_rows = rows
        grid = (1,)
    else:
        # ~4 MiB input tiles; sublane count a multiple of 32 so the block is
        # legal for int8/bool/bf16/f32 alike.
        cap = max(32, (_TILE_BYTES // (lane * itemsize)) // 32 * 32)
        # Force >=2 grid steps so v7x's two TensorCores both get a share.
        half = ((pl.cdiv(rows, 2) + 31) // 32) * 32
        block_rows = min(cap, half)
        grid = (pl.cdiv(rows, block_rows),)

    return _run_kernel(a2d, rows, lane, block_rows, grid)


def simple_not_module(a):
    """JAX/Pallas equivalent of SimpleNotModule.forward: not(not(a)) as bool."""
    a = jnp.asarray(a)
    orig_shape = a.shape
    total = int(a.size)

    if total == 0:
        return jnp.zeros(orig_shape, dtype=jnp.bool_)

    # Double logical-not of a bool array is the identity: no kernel, no HBM pass.
    if a.dtype == jnp.bool_:
        return a

    flat = a.reshape(-1)

    # Widest lane count (multiple of 128) that divides total -> free reshape.
    lane = next((c for c in (1024, 512, 256, 128) if total % c == 0), None)

    if lane is not None:
        return _tiled_not_not(flat, lane).reshape(orig_shape)

    # Awkward length: kernel on the 128-aligned prefix, tiny jnp tail
    # (avoids a full-array pad copy).
    lane = 128
    aligned = (total // lane) * lane
    tail = flat[aligned:] != 0
    if aligned == 0:
        return tail.reshape(orig_shape)
    head = _tiled_not_not(flat[:aligned], lane).reshape(-1)
    return jnp.concatenate([head, tail]).reshape(orig_shape)


if __name__ == "__main__":
    key = jax.random.PRNGKey(0)

    # Float input exercises the Pallas kernel (bool inputs short-circuit).
    x = jax.random.normal(key, (2, 4, 16, 16), dtype=jnp.float32)
    x = x.at[0, 0, 0, :4].set(jnp.array([0.0, 0.5, -2.0, 1e-3], dtype=jnp.float32))
    y = jax.block_until_ready(simple_not_module(x))
    ref = jnp.logical_not(jnp.logical_not(x))
    assert y.dtype == jnp.bool_ and y.shape == x.shape
    assert bool(jnp.all(y == ref))

    # Bool input: identity via short-circuit (semantics of double logical_not).
    xb = jax.random.bernoulli(jax.random.PRNGKey(1), 0.5, (2, 4, 16, 16))
    yb = jax.block_until_ready(simple_not_module(xb))
    assert yb.dtype == jnp.bool_ and bool(jnp.all(yb == xb))

    # Awkward (non-multiple-of-128) length exercises the prefix+tail path.
    xi = jnp.arange(1000, dtype=jnp.int32) % 7
    yi = jax.block_until_ready(simple_not_module(xi))
    assert bool(jnp.all(yi == (xi != 0)))

    print("KERNEL_OK")
</pallas_src>

<mosaic_0001>
module attributes {stable_mosaic.version = 11 : i64} {
  func.func @_not_not_kernel(%arg0: i32, %arg1: memref<2x1024xf32, #tpu.memory_space<vmem>>, %arg2: memref<2x1024xi32, #tpu.memory_space<vmem>>) attributes {dimension_semantics = [#tpu.dimension_semantics<parallel>], iteration_bounds = array<i64: 1>, scalar_prefetch = 0 : i64, scratch_operands = 0 : i64, tpu.core_type = #tpu.core_type<tc>, window_params = [{transform_indices = @transform_0, window_bounds = array<i64: 2, 1024>}, {transform_indices = @transform_1, window_bounds = array<i64: 2, 1024>}]} {
    %c0 = arith.constant 0 : index
    %c0_0 = arith.constant 0 : index
    %0 = vector.load %arg1[%c0, %c0_0] : memref<2x1024xf32, #tpu.memory_space<vmem>>, vector<2x1024xf32>
    %cst = arith.constant 0.000000e+00 : f32
    %1 = vector.broadcast %cst : f32 to vector<2x1024xf32>
    %2 = arith.cmpf one, %0, %1 : vector<2x1024xf32>
    %c0_1 = arith.constant 0 : index
    %c0_2 = arith.constant 0 : index
    %3 = vector.load %arg2[%c0_1, %c0_2] : memref<2x1024xi32, #tpu.memory_space<vmem>>, vector<2x1024xi32>
    %4 = arith.extui %2 : vector<2x1024xi1> to vector<2x1024xi32>
    %cst_3 = arith.constant dense<0> : vector<2x1024xi32>
    %5 = arith.cmpi ne, %3, %cst_3 : vector<2x1024xi32>
    tpu.vector_store %arg2[%c0_1, %c0_2], %4 {strides = array<i32>} : memref<2x1024xi32, #tpu.memory_space<vmem>>, vector<2x1024xi32>,
    return
  }
  func.func @transform_0(%arg0: i32) -> (i32, i32) {
    %c0_i32 = arith.constant 0 : i32
    %c0_i32_0 = arith.constant 0 : i32
    return %arg0, %c0_i32 : i32, i32
  }
  func.func @transform_1(%arg0: i32) -> (i32, i32) {
    %c0_i32 = arith.constant 0 : i32
    %c0_i32_0 = arith.constant 0 : i32
    return %arg0, %c0_i32 : i32, i32
  }
}

module attributes {stable_mosaic.version = 11 : i64} {
  func.func @_not_not_kernel(%arg0: i32, %arg1: memref<2x1024xf32, #tpu.memory_space<vmem>>, %arg2: memref<2x1024xi8, #tpu.memory_space<vmem>>) attributes {dimension_semantics = [#tpu.dimension_semantics<parallel>], iteration_bounds = array<i64: 1>, scalar_prefetch = 0 : i64, scratch_operands = 0 : i64, tpu.core_type = #tpu.core_type<tc>, window_params = [{transform_indices = @transform_0, window_bounds = array<i64: 2, 1024>}, {transform_indices = @transform_1, window_bounds = array<i64: 2, 1024>}]} {
    %c0 = arith.constant 0 : index
    %c0_0 = arith.constant 0 : index
    %0 = vector.load %arg1[%c0, %c0_0] : memref<2x1024xf32, #tpu.memory_space<vmem>>, vector<2x1024xf32>
    %cst = arith.constant 0.000000e+00 : f32
    %1 = vector.broadcast %cst : f32 to vector<2x1024xf32>
    %2 = arith.cmpf one, %0, %1 : vector<2x1024xf32>
    %3 = arith.extui %2 : vector<2x1024xi1> to vector<2x1024xi8>
    %c0_1 = arith.constant 0 : index
    %c0_2 = arith.constant 0 : index
    %4 = vector.load %arg2[%c0_1, %c0_2] : memref<2x1024xi8, #tpu.memory_space<vmem>>, vector<2x1024xi8>
    tpu.vector_store %arg2[%c0_1, %c0_2], %3 {strides = array<i32>} : memref<2x1024xi8, #tpu.memory_space<vmem>>, vector<2x1024xi8>,
    return
  }
  func.func @transform_0(%arg0: i32) -> (i32, i32) {
    %c0_i32 = arith.constant 0 : i32
    %c0_i32_0 = arith.constant 0 : i32
    return %arg0, %c0_i32 : i32, i32
  }
  func.func @transform_1(%arg0: i32) -> (i32, i32) {
    %c0_i32 = arith.constant 0 : i32
    %c0_i32_0 = arith.constant 0 : i32
    return %arg0, %c0_i32 : i32, i32
  }
}

</mosaic_0001>

<llo_original>
// kernel: tpu_custom_call.1
$region0: #{tpu_custom_call.1}
  #allocation0 [shape = 'u32[]', space=smem, size = 0x4, offset = 0x4, fixed_abs, tag = 'smem constant byte address 0x4 - core index']
  #allocation1 [shape = 'u32[144,128]{1,0:T(1,128)}', space=vmem, size = 0x12000, scoped, tag = 'internal scratch']
  %s0 = inlined_call_operand.hbm [shape: f32[2,1024], index: 0, kind: input, shape index: {}]
  %s1 = inlined_call_operand.vmem [shape: s32[2,1024], index: 1, kind: output, shape index: {}]
  %s2 = sld [smem:[#allocation0]]
  $region18: #{tpu_custom_call.1} parent=0
    _
  %s4 = ssub.s32 1, %s2
  %s5 = scalar_select 0, %s4, %s2
  $region1: #{tpu_custom_call.1} parent=0
    #allocation2 [shape = 'u8[8192]{0}', space=vmem, size = 0x2000, scoped, tag = 'input window, operand 0, single buffered']
    #allocation3 [shape = 's32[1]{0}', space=sflag, size = 0x4, scoped, tag = 'scoped memory for tpu_custom_call.1']
    %6 = vsyncpa [#allocation3], 0
    // Predicated region
    $region2: #{tpu_custom_call.1} parent=1 // pred_check
      _
    $region3: #{tpu_custom_call.1} parent=1 // pred_check_branch
      %8 = sbr.rel (0) target = $region5
    $region4: #{tpu_custom_call.1} parent=1 // pred_region
      %s10 = ssub.s32 256, 256
      %11 = vsyncadd [#allocation3], %s10
      %s13 = sshll.u32 [#allocation2], 4
      %s14 = int_to_ptr.vmem [resolvable:$true] %s13
      %16 = dma.hbm_to_vmem [thread:$0]  %s0, 256, %s14, [#allocation3]
    $region5: #{tpu_custom_call.1} parent=1 // pred_fallthru
      _
    // Predicated region
    $region6: #{tpu_custom_call.1} parent=1 // pred_check
      _
    $region7: #{tpu_custom_call.1} parent=1 // pred_check_branch
      %18 = sbr.rel (0) target = $region9
    $region8: #{tpu_custom_call.1} parent=1 // pred_region
      %19 = dma.done [#allocation3], 256
    $region9: #{tpu_custom_call.1} parent=1 // pred_fallthru
      _
    %v20 = vld [vmem:[#allocation2] sm:$0xff]
    %v21 = vld [vmem:[#allocation2 + $0x8] sm:$0xff]
    %vm22 = vcmp.ne.f32.partialorder %v20, 0.0
    %vm23 = vcmp.ne.f32.partialorder %v21, 0.0
    %v24 = vsel %vm22, 1, 0
    %v25 = vsel %vm23, 1, 0
    %26 = vst [vmem:[%s1] sm:$0xff] %v24
    %27 = vst [vmem:[%s1 + $0x8] sm:$0xff] %v25
    // Predicated region
    $region10: #{tpu_custom_call.1} parent=1 // pred_check
      _
    $region11: #{tpu_custom_call.1} parent=1 // pred_check_branch
      %29 = sbr.rel (0) target = $region13
    $region12: #{tpu_custom_call.1} parent=1 // pred_region
      _
    $region13: #{tpu_custom_call.1} parent=1 // pred_fallthru
      _
    // Predicated region
    $region14: #{tpu_custom_call.1} parent=1 // pred_check
      _
    $region15: #{tpu_custom_call.1} parent=1 // pred_check_branch
      %31 = sbr.rel (0) target = $region17
    $region16: #{tpu_custom_call.1} parent=1 // pred_region
      _
    $region17: #{tpu_custom_call.1} parent=1 // pred_fallthru
      _
    %32 = vsyncpa [#allocation3], 1

// kernel: tpu_custom_call.1
$region0: #{tpu_custom_call.1}
  #allocation0 [shape = 'u32[]', space=smem, size = 0x4, offset = 0x4, fixed_abs, tag = 'smem constant byte address 0x4 - core index']
  #allocation1 [shape = 'u32[144,128]{1,0:T(1,128)}', space=vmem, size = 0x12000, scoped, tag = 'internal scratch']
  %s0 = inlined_call_operand.hbm [shape: f32[2,1024], index: 0, kind: input, shape index: {}]
  %s1 = inlined_call_operand.hbm [shape: s8[2,1024], index: 1, kind: output, shape index: {}]
  %s2 = sld [smem:[#allocation0]]
  $region18: #{tpu_custom_call.1} parent=0
    _
  %s4 = ssub.s32 1, %s2
  %s5 = scalar_select 0, %s4, %s2
  $region1: #{tpu_custom_call.1} parent=0
    #allocation2 [shape = 'u8[8192]{0}', space=vmem, size = 0x2000, scoped, tag = 'input window, operand 0, single buffered']
    #allocation3 [shape = 's32[1]{0}', space=sflag, size = 0x4, scoped, tag = 'scoped memory for tpu_custom_call.1']
    #allocation4 [shape = 's32[1]{0}', space=sflag, size = 0x4, scoped, tag = 'scoped memory for tpu_custom_call.1']
    #allocation5 [shape = 'u8[4096]{0}', space=vmem, size = 0x1000, scoped, tag = 'output window, operand 0, single buffered']
    %6 = vsyncpa [#allocation3], 0
    %7 = vsyncpa [#allocation4], 0
    // Predicated region
    $region2: #{tpu_custom_call.1} parent=1 // pred_check
      _
    $region3: #{tpu_custom_call.1} parent=1 // pred_check_branch
      %9 = sbr.rel (0) target = $region5
    $region4: #{tpu_custom_call.1} parent=1 // pred_region
      %s11 = ssub.s32 256, 256
      %12 = vsyncadd [#allocation3], %s11
      %s14 = sshll.u32 [#allocation2], 4
      %s15 = int_to_ptr.vmem [resolvable:$true] %s14
      %17 = dma.hbm_to_vmem [thread:$0]  %s0, 256, %s15, [#allocation3]
    $region5: #{tpu_custom_call.1} parent=1 // pred_fallthru
      _
    // Predicated region
    $region6: #{tpu_custom_call.1} parent=1 // pred_check
      _
    $region7: #{tpu_custom_call.1} parent=1 // pred_check_branch
      %19 = sbr.rel (0) target = $region9
    $region8: #{tpu_custom_call.1} parent=1 // pred_region
      %20 = dma.done [#allocation3], 256
    $region9: #{tpu_custom_call.1} parent=1 // pred_fallthru
      _
    %v23 = vld [vmem:[#allocation2] sm:$0xff]
    %v24 = vld [vmem:[#allocation2 + $0x8] sm:$0xff]
    %vm25 = vcmp.ne.f32.partialorder %v23, 0.0
    %vm26 = vcmp.ne.f32.partialorder %v24, 0.0
    %v27 = vsel %vm25, 1, 0
    %v28 = vsel %vm26, 1, 0
    %v29 = vcombine.high %v27, %v27
    %v31 = vunpack.c.l.s4 1983009808
    %v32 = vunpack.c.0.s8 %v31
    %v33 = vlaneseq
    %v34 = vshrl.u32 %v33, 7
    %v35 = vsub.s32 %v32, %v34
    %v36 = vrot.slane %v27, %v35
    %v38 = vunpack.c.l.s4 1983009808
    %v39 = vunpack.c.0.s8 %v38
    %v40 = vlaneseq
    %v41 = vshrl.u32 %v40, 7
    %v42 = vsub.s32 %v39, %v41
    %v43 = vrot.slane %v29, %v42
    %v44 = vcombine.high %v28, %v28
    %v46 = vunpack.c.l.s4 1983009808
    %v47 = vunpack.c.0.s8 %v46
    %v48 = vlaneseq
    %v49 = vshrl.u32 %v48, 7
    %v50 = vsub.s32 %v47, %v49
    %v51 = vrot.slane %v28, %v50
    %v53 = vunpack.c.l.s4 1983009808
    %v54 = vunpack.c.0.s8 %v53
    %v55 = vlaneseq
    %v56 = vshrl.u32 %v55, 7
    %v57 = vsub.s32 %v54, %v56
    %v58 = vrot.slane %v44, %v57
    %vm59 = vcmp.ne.s32.totalorder %v36, 0
    %vm60 = vcmp.ne.s32.totalorder %v43, 0
    %vm61 = vcmp.ne.s32.totalorder %v51, 0
    %vm62 = vcmp.ne.s32.totalorder %v58, 0
    %v63 = vsel %vm59, 1, 0
    %v64 = vsel %vm60, 1, 0
    %v65 = vsel %vm61, 1, 0
    %v66 = vsel %vm62, 1, 0
    %v67 = vpack.c.b16 %v64, %v63
    %v68 = vpack.c.b16 %v66, %v65
    %v69 = vpack.c.b8 %v68, %v67
    %vm70 = vnez %v69
    %v71 = vsel %vm70, 16843009, 0
    %v72 = vcombine.high %v71, %v71
    %v74 = vunpack.c.l.s4 1966171168
    %v75 = vunpack.c.0.s8 %v74
    %v76 = vlaneseq
    %v77 = vshrl.u32 %v76, 7
    %v78 = vsub.s32 %v75, %v77
    %v79 = vrot.slane %v71, %v78
    %v81 = vunpack.c.l.s4 1966171168
    %v82 = vunpack.c.0.s8 %v81
    %v83 = vlaneseq
    %v84 = vshrl.u32 %v83, 7
    %v85 = vsub.s32 %v82, %v84
    %v86 = vrot.slane %v72, %v85
    %v87 = vcombine.high %v79, %v79
    %v88 = vcombine.high %v86, %v86
    %v90 = vunpack.c.l.s4 1966171168
    %v91 = vunpack.c.0.s8 %v90
    %v92 = vlaneseq
    %v93 = vshrl.u32 %v92, 7
    %v94 = vsub.s32 %v91, %v93
    %v95 = vrot.slane %v79, %v94
    %v97 = vunpack.c.l.s4 1966171168
    %v98 = vunpack.c.0.s8 %v97
    %v99 = vlaneseq
    %v100 = vshrl.u32 %v99, 7
    %v101 = vsub.s32 %v98, %v100
    %v102 = vrot.slane %v86, %v101
    %v104 = vunpack.c.l.s4 1966171168
    %v105 = vunpack.c.0.s8 %v104
    %v106 = vlaneseq
    %v107 = vshrl.u32 %v106, 7
    %v108 = vsub.s32 %v105, %v107
    %v109 = vrot.slane %v87, %v108
    %v111 = vunpack.c.l.s4 1966171168
    %v112 = vunpack.c.0.s8 %v111
    %v113 = vlaneseq
    %v114 = vshrl.u32 %v113, 7
    %v115 = vsub.s32 %v112, %v114
    %v116 = vrot.slane %v88, %v115
    %v117 = vcombine.high %v95, %v95
    %v118 = vcombine.high %v102, %v102
    %v119 = vcombine.high %v109, %v109
    %v120 = vcombine.high %v116, %v116
    %vm121 = vnez %v95
    %vm122 = vnez %v109
    %vm123 = vnez %v117
    %vm124 = vnez %v119
    %vm125 = vnez %v102
    %vm126 = vnez %v116
    %vm127 = vnez %v118
    %vm128 = vnez %v120
    %v129 = vsel %vm121, 16843009, 0
    %v130 = vsel %vm122, 16843009, 0
    %v131 = vsel %vm123, 16843009, 0
    %v132 = vsel %vm124, 16843009, 0
    %v133 = vsel %vm125, 16843009, 0
    %v134 = vsel %vm126, 16843009, 0
    %v135 = vsel %vm127, 16843009, 0
    %v136 = vsel %vm128, 16843009, 0
    %v137 = vcombine.low %v129, %v130
    %v138 = vcombine.low %v131, %v132
    %v139 = vcombine.low %v133, %v134
    %v140 = vcombine.low %v135, %v136
    %v142 = vunpack.c.l.s4 1966171168
    %v143 = vunpack.c.0.s8 %v142
    %v144 = vlaneseq
    %v145 = vshrl.u32 %v144, 7
    %v146 = vsub.s32 %v143, %v145
    %v147 = vrot.slane %v137, %v146
    %v149 = vunpack.c.l.s4 1966171168
    %v150 = vunpack.c.0.s8 %v149
    %v151 = vlaneseq
    %v152 = vshrl.u32 %v151, 7
    %v153 = vsub.s32 %v150, %v152
    %v154 = vrot.slane %v138, %v153
    %v156 = vunpack.c.l.s4 1966171168
    %v157 = vunpack.c.0.s8 %v156
    %v158 = vlaneseq
    %v159 = vshrl.u32 %v158, 7
    %v160 = vsub.s32 %v157, %v159
    %v161 = vrot.slane %v139, %v160
    %v163 = vunpack.c.l.s4 1966171168
    %v164 = vunpack.c.0.s8 %v163
    %v165 = vlaneseq
    %v166 = vshrl.u32 %v165, 7
    %v167 = vsub.s32 %v164, %v166
    %v168 = vrot.slane %v140, %v167
    %v169 = vcombine.low %v147, %v154
    %v170 = vcombine.low %v161, %v168
    %v172 = vunpack.c.l.s4 1966171168
    %v173 = vunpack.c.0.s8 %v172
    %v174 = vlaneseq
    %v175 = vshrl.u32 %v174, 7
    %v176 = vsub.s32 %v173, %v175
    %v177 = vrot.slane %v169, %v176
    %v179 = vunpack.c.l.s4 1966171168
    %v180 = vunpack.c.0.s8 %v179
    %v181 = vlaneseq
    %v182 = vshrl.u32 %v181, 7
    %v183 = vsub.s32 %v180, %v182
    %v184 = vrot.slane %v170, %v183
    %v185 = vcombine.low %v177, %v184
    %vm186 = vcmask 1040384
    %vm187 = vsmask.f32 256
    %vm188 = vmand %vm186, %vm187
    %vm189 = vcmask 1041409
    %vm190 = vsmask.f32 1280
    %vm191 = vmand %vm189, %vm190
    %vm192 = vmor %vm191, %vm188
    %vm193 = vcmask 1042434
    %vm194 = vsmask.f32 2304
    %vm195 = vmand %vm193, %vm194
    %vm196 = vmor %vm195, %vm192
    %vm197 = vcmask 1043459
    %vm198 = vsmask.f32 3328
    %vm199 = vmand %vm197, %vm198
    %vm200 = vmor %vm199, %vm196
    %vm201 = vcmask 1044484
    %vm202 = vsmask.f32 4352
    %vm203 = vmand %vm201, %vm202
    %vm204 = vmor %vm203, %vm200
    %vm205 = vcmask 1045509
    %vm206 = vsmask.f32 5376
    %vm207 = vmand %vm205, %vm206
    %vm208 = vmor %vm207, %vm204
    %vm209 = vcmask 1046534
    %vm210 = vsmask.f32 6400
    %vm211 = vmand %vm209, %vm210
    %vm212 = vmor %vm211, %vm208
    %vm213 = vcmask 1047559
    %vm214 = vsmask.f32 7424
    %vm215 = vmand %vm213, %vm214
    %vm216 = vmor %vm215, %vm212
    %v217 = vld [vmem:[#allocation5] sm:$0xff]
    %v218 = vsel %vm216, %v185, %v217
    %219 = vst [vmem:[#allocation5] sm:$0xff] %v218
    // Predicated region
    $region10: #{tpu_custom_call.1} parent=1 // pred_check
      _
    $region11: #{tpu_custom_call.1} parent=1 // pred_check_branch
      %221 = sbr.rel (0) target = $region13
    $region12: #{tpu_custom_call.1} parent=1 // pred_region
      %s223 = ssub.s32 128, 128
      %224 = vsyncadd [#allocation4], %s223
      %s226 = sshll.u32 [#allocation5], 4
      %s227 = int_to_ptr.vmem [resolvable:$true] %s226
      %229 = dma.vmem_to_hbm [thread:$0]  %s227, 128, %s1, [#allocation4]
    $region13: #{tpu_custom_call.1} parent=1 // pred_fallthru
      _
    // Predicated region
    $region14: #{tpu_custom_call.1} parent=1 // pred_check
      _
    $region15: #{tpu_custom_call.1} parent=1 // pred_check_branch
      %231 = sbr.rel (0) target = $region17
    $region16: #{tpu_custom_call.1} parent=1 // pred_region
      %232 = dma.done [#allocation4], 128
    $region17: #{tpu_custom_call.1} parent=1 // pred_fallthru
      _
    %233 = vsyncpa [#allocation3], 1
    %234 = vsyncpa [#allocation4], 1

</llo_original>
